<compile_context>
chip_gen: v7x
topology: tpu7x:2x2x1
jax: 0.10.0
libtpu: 0.0.40
codegen_flags: <defaults>
</compile_context>

<pallas_src>
import functools

import jax
import jax.numpy as jnp
from jax.experimental import pallas as pl
from jax.experimental.pallas import tpu as pltpu

LANES = 128
SUBLANES = 8
ROW_BLOCK = SUBLANES * LANES          # 1024 elements
DEFAULT_TILE_ROWS = 8192              # 8192 x 128 x 4B = 4 MiB per f32 input per step
VMEM_LIMIT_BYTES = 48 * 1024 * 1024   # < v7x 64 MiB physical; plenty on v5e/v6e


@functools.lru_cache(maxsize=1)
def _num_core_splits():
    # v7x has two TensorCores per chip -> split the reduction across them via a
    # leading "parallel" grid axis.  v5e/v6e are single-TC -> flat grid.
    try:
        kind = jax.devices()[0].device_kind.lower()
    except Exception:
        return 1
    return 2 if "v7" in kind else 1


def _wmse_kernel(pred_ref, true_ref, sum_ref, cnt_ref, *,
                 weight, ignore_pixel, tile_rows, tiles_per_core,
                 n_tiles, n_rows, core_split, needs_mask):
    if core_split:
        c = pl.program_id(0)          # parallel (core-split) axis
        j = pl.program_id(1)          # arbitrary (reduction) axis
        tile_id = c * tiles_per_core + j
    else:
        j = pl.program_id(0)
        tile_id = j

    @pl.when(j == 0)
    def _init():
        sum_ref[...] = jnp.zeros((SUBLANES, LANES), jnp.float32)
        cnt_ref[...] = jnp.zeros((SUBLANES, LANES), jnp.float32)

    # Inputs stream in native dtype; upcast on the VPU (no wrapper-side cast).
    p = pred_ref[...].astype(jnp.float32)
    t = true_ref[...].astype(jnp.float32)

    valid = t != ignore_pixel
    diff = p - t
    sq = diff * diff
    if weight != 1:   # static Python branch (weight is a static number)
        w = jnp.where(t > 0, jnp.float32(weight), jnp.float32(1.0 - weight))
        sq = w * sq
    sq = jnp.where(valid, sq, 0.0)
    cnt = valid.astype(jnp.float32)

    def _accumulate(s, n):
        # vreg-shaped partial accumulation (pure VPU adds over row groups).
        sum_ref[...] += jnp.sum(s.reshape(-1, SUBLANES, LANES), axis=0)
        cnt_ref[...] += jnp.sum(n.reshape(-1, SUBLANES, LANES), axis=0)

    if not needs_mask:
        # Fully aligned grid: no bounds mask anywhere (static skip).
        _accumulate(sq, cnt)
    else:
        last_tile = n_tiles - 1

        @pl.when(tile_id < last_tile)
        def _interior():
            # Interior tiles: mask-free accumulate (hot path).
            _accumulate(sq, cnt)

        @pl.when(tile_id >= last_tile)
        def _edge():
            # Final partial tile and/or clamped duplicate steps: bounds mask.
            row0 = jnp.minimum(tile_id, last_tile) * tile_rows
            row = row0 + jax.lax.broadcasted_iota(jnp.int32, sq.shape, 0)
            ok = (row < n_rows) & (tile_id < n_tiles)
            _accumulate(jnp.where(ok, sq, 0.0), jnp.where(ok, cnt, 0.0))


def _masked_wmse_partials_jnp(p, t, *, weight, ignore_pixel):
    """Plain-jnp (sum, count) partials for a tiny ragged tail."""
    p = p.astype(jnp.float32)
    t = t.astype(jnp.float32)
    valid = t != ignore_pixel
    sq = (p - t) ** 2
    if weight != 1:
        w = jnp.where(t > 0, jnp.float32(weight), jnp.float32(1.0 - weight))
        sq = w * sq
    return (jnp.sum(jnp.where(valid, sq, 0.0)),
            jnp.sum(valid.astype(jnp.float32)))


def wmse_loss(y_pred, y_true, *, weight=1, ignore_pixel=-1,
              tile_rows=DEFAULT_TILE_ROWS):
    """Pallas equivalent of WMSELoss(weight, ignore_pixel)(y_pred, y_true).

    `weight` and `ignore_pixel` must be static Python numbers, and
    `ignore_pixel` must be exactly representable in the input dtype.
    """
    assert y_pred.shape == y_true.shape
    n_elem = y_pred.size
    if n_elem == 0:
        return jnp.float32(0.0)

    p_flat = jnp.ravel(y_pred)   # free (bitcast) for contiguous inputs
    t_flat = jnp.ravel(y_true)

    tail = n_elem % ROW_BLOCK
    aligned = n_elem - tail

    if tail:
        # <1024-element ragged tail reduced wrapper-side; no full-tensor
        # pad/concatenate copy through HBM.
        tail_sum, tail_cnt = _masked_wmse_partials_jnp(
            p_flat[aligned:], t_flat[aligned:],
            weight=weight, ignore_pixel=float(ignore_pixel))
    else:
        tail_sum = jnp.float32(0.0)
        tail_cnt = jnp.float32(0.0)

    if aligned == 0:
        total_sum, total_cnt = tail_sum, tail_cnt
    else:
        n_rows = aligned // LANES            # multiple of 8 by construction
        p2 = (p_flat[:aligned] if tail else p_flat).reshape(n_rows, LANES)
        t2 = (t_flat[:aligned] if tail else t_flat).reshape(n_rows, LANES)

        tile_rows = max(SUBLANES, tile_rows - tile_rows % SUBLANES)
        tile_rows = min(tile_rows, n_rows)
        n_tiles = pl.cdiv(n_rows, tile_rows)

        num_splits = _num_core_splits() if n_tiles > 1 else 1
        core_split = num_splits > 1
        tiles_per_core = pl.cdiv(n_tiles, num_splits)
        total_steps = num_splits * tiles_per_core
        needs_mask = (n_rows % tile_rows != 0) or (total_steps != n_tiles)

        kernel = functools.partial(
            _wmse_kernel, weight=weight, ignore_pixel=float(ignore_pixel),
            tile_rows=tile_rows, tiles_per_core=tiles_per_core,
            n_tiles=n_tiles, n_rows=n_rows, core_split=core_split,
            needs_mask=needs_mask)

        if core_split:
            grid = (num_splits, tiles_per_core)
            # Clamp so the block start never goes fully out of bounds; clamped
            # duplicate steps are zeroed in-kernel (tile_id >= n_tiles).
            in_index = lambda c, j: (jnp.minimum(c * tiles_per_core + j,
                                                 n_tiles - 1), 0)
            out_index = lambda c, j: (c, 0)
            # TODO(synk): if v7x profiling shows only one TC busy, switch the
            # leading axis to pltpu.CORE_PARALLEL / pl.core_map semantics.
            dim_sems = ("parallel", "arbitrary")
        else:
            grid = (n_tiles,)
            in_index = lambda j: (j, 0)
            out_index = lambda j: (0, 0)
            dim_sems = ("arbitrary",)

        part_shape = (num_splits * SUBLANES, LANES)
        sums, cnts = pl.pallas_call(
            kernel,
            out_shape=(jax.ShapeDtypeStruct(part_shape, jnp.float32),
                       jax.ShapeDtypeStruct(part_shape, jnp.float32)),
            grid_spec=pltpu.PrefetchScalarGridSpec(
                num_scalar_prefetch=0,
                grid=grid,
                in_specs=[pl.BlockSpec((tile_rows, LANES), in_index),
                          pl.BlockSpec((tile_rows, LANES), in_index)],
                out_specs=[pl.BlockSpec((SUBLANES, LANES), out_index),
                           pl.BlockSpec((SUBLANES, LANES), out_index)],
            ),
            compiler_params=pltpu.CompilerParams(
                dimension_semantics=dim_sems,
                vmem_limit_bytes=VMEM_LIMIT_BYTES),
        )(p2, t2)

        total_sum = jnp.sum(sums) + tail_sum
        total_cnt = jnp.sum(cnts) + tail_cnt

    # mean over masked elements; empty selection -> NaN in torch -> 0.0
    return jnp.where(total_cnt > 0, total_sum / total_cnt, jnp.float32(0.0))


def _reference(y_pred, y_true, *, weight=1, ignore_pixel=-1):
    y_pred = y_pred.astype(jnp.float32)
    y_true = y_true.astype(jnp.float32)
    mask = y_true != ignore_pixel
    diff2 = (y_pred - y_true) ** 2
    if weight != 1:
        w = jnp.where(y_true > 0, weight, 1.0 - weight)
        diff2 = w * diff2
    cnt = jnp.sum(mask)
    s = jnp.sum(jnp.where(mask, diff2, 0.0))
    return jnp.where(cnt > 0, s / cnt, 0.0)


if __name__ == "__main__":
    key = jax.random.PRNGKey(0)
    k1, k2, k3 = jax.random.split(key, 3)

    B, C, H, W = 2, 4, 16, 16
    y_pred = jax.random.normal(k1, (B, C, H, W), dtype=jnp.float32)
    y_true = jax.random.normal(k2, (B, C, H, W), dtype=jnp.float32)
    # mark ~25% of pixels as ignore_pixel (-1)
    ignore_mask = jax.random.uniform(k3, (B, C, H, W)) < 0.25
    y_true = jnp.where(ignore_mask, jnp.float32(-1.0), y_true)

    # weight == 1 path (plain masked MSE), aligned zero-copy path, no mask ops
    out1 = jax.block_until_ready(wmse_loss(y_pred, y_true, weight=1))
    ref1 = _reference(y_pred, y_true, weight=1)
    assert jnp.allclose(out1, ref1, rtol=1e-5, atol=1e-6), (out1, ref1)

    # weight != 1 path (weighted masked MSE)
    out2 = jax.block_until_ready(wmse_loss(y_pred, y_true, weight=0.7))
    ref2 = _reference(y_pred, y_true, weight=0.7)
    assert jnp.allclose(out2, ref2, rtol=1e-5, atol=1e-6), (out2, ref2)

    # all-ignored input -> NaN in torch -> 0.0
    out3 = jax.block_until_ready(
        wmse_loss(y_pred, jnp.full_like(y_true, -1.0), weight=1))
    assert out3 == 0.0, out3

    # small tile -> multi-tile accumulation, exact division (mask-free)
    out4 = jax.block_until_ready(
        wmse_loss(y_pred, y_true, weight=0.7, tile_rows=8))
    assert jnp.allclose(out4, ref2, rtol=1e-5, atol=1e-6), (out4, ref2)

    # partial final block -> exercises the pl.when edge/mask path
    yp5 = jax.random.normal(k1, (3, 1, 32, 32), dtype=jnp.float32)
    yt5 = jax.random.normal(k2, (3, 1, 32, 32), dtype=jnp.float32)
    out5 = jax.block_until_ready(wmse_loss(yp5, yt5, weight=0.7, tile_rows=16))
    ref5 = _reference(yp5, yt5, weight=0.7)
    assert jnp.allclose(out5, ref5, rtol=1e-5, atol=1e-6), (out5, ref5)

    # ragged element count (not a multiple of 8*128) -> kernel prefix + jnp tail
    yp6 = jax.random.normal(k1, (2, 3, 17, 19), dtype=jnp.float32)
    yt6 = jax.random.normal(k2, (2, 3, 17, 19), dtype=jnp.float32)
    out6 = jax.block_until_ready(wmse_loss(yp6, yt6, weight=0.7))
    ref6 = _reference(yp6, yt6, weight=0.7)
    assert jnp.allclose(out6, ref6, rtol=1e-5, atol=1e-6), (out6, ref6)

    # bf16 inputs stream natively and are upcast in-kernel
    out7 = jax.block_until_ready(
        wmse_loss(y_pred.astype(jnp.bfloat16), y_true.astype(jnp.bfloat16)))
    ref7 = _reference(y_pred.astype(jnp.bfloat16), y_true.astype(jnp.bfloat16))
    assert jnp.allclose(out7, ref7, rtol=1e-2, atol=1e-3), (out7, ref7)

    print("KERNEL_OK")
</pallas_src>

<mosaic_0001>
module attributes {stable_mosaic.version = 11 : i64} {
  func.func @_wmse_kernel(%arg0: i32, %arg1: memref<16x128xf32, #tpu.memory_space<vmem>>, %arg2: memref<16x128xf32, #tpu.memory_space<vmem>>, %arg3: memref<8x128xf32, #tpu.memory_space<vmem>>, %arg4: memref<8x128xf32, #tpu.memory_space<vmem>>) attributes {dimension_semantics = [#tpu.dimension_semantics<arbitrary>], iteration_bounds = array<i64: 1>, scalar_prefetch = 0 : i64, scratch_operands = 0 : i64, tpu.core_type = #tpu.core_type<tc>, window_params = [{transform_indices = @transform_0, window_bounds = array<i64: 16, 128>}, {transform_indices = @transform_1, window_bounds = array<i64: 16, 128>}, {pipeline_mode = #tpu.pipeline_mode<synchronous>, transform_indices = @transform_2, window_bounds = array<i64: 8, 128>}, {pipeline_mode = #tpu.pipeline_mode<synchronous>, transform_indices = @transform_3, window_bounds = array<i64: 8, 128>}]} {
    %c0_i32 = arith.constant 0 : i32
    %0 = arith.cmpi eq, %arg0, %c0_i32 : i32
    %1 = arith.extui %0 : i1 to i32
    %c0_i32_0 = arith.constant 0 : i32
    %2 = arith.cmpi ne, %1, %c0_i32_0 : i32
    scf.if %2 {
      %cst_15 = arith.constant 0.000000e+00 : f32
      %23 = vector.broadcast %cst_15 : f32 to vector<8x128xf32>
      %c0_16 = arith.constant 0 : index
      %c0_17 = arith.constant 0 : index
      %24 = vector.load %arg3[%c0_16, %c0_17] : memref<8x128xf32, #tpu.memory_space<vmem>>, vector<8x128xf32>
      tpu.vector_store %arg3[%c0_16, %c0_17], %23 {strides = array<i32>} : memref<8x128xf32, #tpu.memory_space<vmem>>, vector<8x128xf32>,
      %cst_18 = arith.constant 0.000000e+00 : f32
      %25 = vector.broadcast %cst_18 : f32 to vector<8x128xf32>
      %c0_19 = arith.constant 0 : index
      %c0_20 = arith.constant 0 : index
      %26 = vector.load %arg4[%c0_19, %c0_20] : memref<8x128xf32, #tpu.memory_space<vmem>>, vector<8x128xf32>
      tpu.vector_store %arg4[%c0_19, %c0_20], %25 {strides = array<i32>} : memref<8x128xf32, #tpu.memory_space<vmem>>, vector<8x128xf32>,
    } else {
    }
    %c0 = arith.constant 0 : index
    %c0_1 = arith.constant 0 : index
    %3 = vector.load %arg1[%c0, %c0_1] : memref<16x128xf32, #tpu.memory_space<vmem>>, vector<16x128xf32>
    %c0_2 = arith.constant 0 : index
    %c0_3 = arith.constant 0 : index
    %4 = vector.load %arg2[%c0_2, %c0_3] : memref<16x128xf32, #tpu.memory_space<vmem>>, vector<16x128xf32>
    %cst = arith.constant -1.000000e+00 : f32
    %5 = vector.broadcast %cst : f32 to vector<16x128xf32>
    %6 = arith.cmpf one, %4, %5 : vector<16x128xf32>
    %7 = arith.subf %3, %4 : vector<16x128xf32>
    %8 = arith.mulf %7, %7 : vector<16x128xf32>
    %cst_4 = arith.constant 0.000000e+00 : f32
    %9 = vector.broadcast %cst_4 : f32 to vector<16x128xf32>
    %10 = arith.select %6, %8, %9 : vector<16x128xi1>, vector<16x128xf32>
    %11 = arith.extui %6 : vector<16x128xi1> to vector<16x128xi32>
    %12 = arith.sitofp %11 : vector<16x128xi32> to vector<16x128xf32>
    %c0_5 = arith.constant 0 : index
    %c0_6 = arith.constant 0 : index
    %13 = vector.load %arg3[%c0_5, %c0_6] : memref<8x128xf32, #tpu.memory_space<vmem>>, vector<8x128xf32>
    %14 = vector.shape_cast %10 : vector<16x128xf32> to vector<2x8x128xf32>
    %cst_7 = arith.constant dense<0.000000e+00> : vector<8x128xf32>
    %15 = vector.multi_reduction <add>, %14, %cst_7 [0] : vector<2x8x128xf32> to vector<8x128xf32>
    %16 = arith.addf %13, %15 : vector<8x128xf32>
    %c0_8 = arith.constant 0 : index
    %c0_9 = arith.constant 0 : index
    %17 = vector.load %arg3[%c0_8, %c0_9] : memref<8x128xf32, #tpu.memory_space<vmem>>, vector<8x128xf32>
    tpu.vector_store %arg3[%c0_8, %c0_9], %16 {strides = array<i32>} : memref<8x128xf32, #tpu.memory_space<vmem>>, vector<8x128xf32>,
    %c0_10 = arith.constant 0 : index
    %c0_11 = arith.constant 0 : index
    %18 = vector.load %arg4[%c0_10, %c0_11] : memref<8x128xf32, #tpu.memory_space<vmem>>, vector<8x128xf32>
    %19 = vector.shape_cast %12 : vector<16x128xf32> to vector<2x8x128xf32>
    %cst_12 = arith.constant dense<0.000000e+00> : vector<8x128xf32>
    %20 = vector.multi_reduction <add>, %19, %cst_12 [0] : vector<2x8x128xf32> to vector<8x128xf32>
    %21 = arith.addf %18, %20 : vector<8x128xf32>
    %c0_13 = arith.constant 0 : index
    %c0_14 = arith.constant 0 : index
    %22 = vector.load %arg4[%c0_13, %c0_14] : memref<8x128xf32, #tpu.memory_space<vmem>>, vector<8x128xf32>
    tpu.vector_store %arg4[%c0_13, %c0_14], %21 {strides = array<i32>} : memref<8x128xf32, #tpu.memory_space<vmem>>, vector<8x128xf32>,
    return
  }
  func.func @transform_0(%arg0: i32) -> (i32, i32) {
    %c0_i32 = arith.constant 0 : i32
    %c0_i32_0 = arith.constant 0 : i32
    return %arg0, %c0_i32 : i32, i32
  }
  func.func @transform_1(%arg0: i32) -> (i32, i32) {
    %c0_i32 = arith.constant 0 : i32
    %c0_i32_0 = arith.constant 0 : i32
    return %arg0, %c0_i32 : i32, i32
  }
  func.func @transform_2(%arg0: i32) -> (i32, i32) {
    %c0_i32 = arith.constant 0 : i32
    %c0_i32_0 = arith.constant 0 : i32
    %c0_i32_1 = arith.constant 0 : i32
    return %c0_i32, %c0_i32_0 : i32, i32
  }
  func.func @transform_3(%arg0: i32) -> (i32, i32) {
    %c0_i32 = arith.constant 0 : i32
    %c0_i32_0 = arith.constant 0 : i32
    %c0_i32_1 = arith.constant 0 : i32
    return %c0_i32, %c0_i32_0 : i32, i32
  }
}

</mosaic_0001>

<llo_original>
// kernel: tpu_custom_call.1
$region0: #{tpu_custom_call.1}
  #allocation0 [shape = 'u32[]', space=smem, size = 0x4, offset = 0x4, fixed_abs, tag = 'smem constant byte address 0x4 - core index']
  #allocation1 [shape = 'u32[144,128]{1,0:T(1,128)}', space=vmem, size = 0x12000, scoped, tag = 'internal scratch']
  %s0 = inlined_call_operand.hbm [shape: f32[16,128], index: 0, kind: input, shape index: {}]
  %s1 = inlined_call_operand.hbm [shape: f32[16,128], index: 1, kind: input, shape index: {}]
  %s2 = inlined_call_operand.hbm [shape: f32[8,128], index: 2, kind: output, shape index: {0}]
  %s3 = inlined_call_operand.hbm [shape: f32[8,128], index: 3, kind: output, shape index: {1}]
  %4 = xla_tuple %s2, %s3
  %s5 = sld [smem:[#allocation0]]
  $region38: #{tpu_custom_call.1} parent=0
    _
  %s7 = ssub.s32 1, %s5
  %s8 = scalar_select 0, %s7, %s5
  $region1: #{tpu_custom_call.1} parent=0
    #allocation2 [shape = 'u8[8192]{0}', space=vmem, size = 0x2000, scoped, tag = 'input window, operand 0, single buffered']
    #allocation3 [shape = 's32[1]{0}', space=sflag, size = 0x4, scoped, tag = 'scoped memory for tpu_custom_call.1']
    #allocation4 [shape = 's32[1]{0}', space=sflag, size = 0x4, scoped, tag = 'scoped memory for tpu_custom_call.1']
    #allocation5 [shape = 'u8[8192]{0}', space=vmem, size = 0x2000, scoped, tag = 'input window, operand 1, single buffered']
    #allocation6 [shape = 's32[1]{0}', space=sflag, size = 0x4, scoped, tag = 'scoped memory for tpu_custom_call.1']
    #allocation7 [shape = 'u8[4096]{0}', space=vmem, size = 0x1000, scoped, tag = 'output window, operand 0, single buffered']
    #allocation8 [shape = 'u8[4096]{0}', space=vmem, size = 0x1000, scoped, tag = 'output window, operand 1, single buffered']
    #allocation9 [shape = 's32[1]{0}', space=sflag, size = 0x4, scoped, tag = 'scoped memory for tpu_custom_call.1']
    %9 = vsyncpa [#allocation3], 0
    %10 = vsyncpa [#allocation6], 0
    %11 = vsyncpa [#allocation4], 0
    %12 = vsyncpa [#allocation9], 0
    // Predicated region
    $region2: #{tpu_custom_call.1} parent=1 // pred_check
      _
    $region3: #{tpu_custom_call.1} parent=1 // pred_check_branch
      %14 = sbr.rel (0) target = $region5
    $region4: #{tpu_custom_call.1} parent=1 // pred_region
      %s16 = ssub.s32 256, 256
      %17 = vsyncadd [#allocation3], %s16
      %s18 = sshll.u32 [#allocation2], 4
      %s19 = int_to_ptr.vmem [resolvable:$true] %s18
      %24 = dma.hbm_to_vmem [thread:$0]  %s0, 256, %s19, [#allocation3], 128, 128, 8
    $region5: #{tpu_custom_call.1} parent=1 // pred_fallthru
      _
    // Predicated region
    $region6: #{tpu_custom_call.1} parent=1 // pred_check
      _
    $region7: #{tpu_custom_call.1} parent=1 // pred_check_branch
      %26 = sbr.rel (0) target = $region9
    $region8: #{tpu_custom_call.1} parent=1 // pred_region
      %s28 = ssub.s32 256, 256
      %29 = vsyncadd [#allocation6], %s28
      %s30 = sshll.u32 [#allocation5], 4
      %s31 = int_to_ptr.vmem [resolvable:$true] %s30
      %36 = dma.hbm_to_vmem [thread:$0]  %s1, 256, %s31, [#allocation6], 128, 128, 8
    $region9: #{tpu_custom_call.1} parent=1 // pred_fallthru
      _
    // Predicated region
    $region10: #{tpu_custom_call.1} parent=1 // pred_check
      _
    $region11: #{tpu_custom_call.1} parent=1 // pred_check_branch
      %38 = sbr.rel (0) target = $region13
    $region12: #{tpu_custom_call.1} parent=1 // pred_region
      %39 = dma.done [#allocation3], 256
    $region13: #{tpu_custom_call.1} parent=1 // pred_fallthru
      _
    // Predicated region
    $region14: #{tpu_custom_call.1} parent=1 // pred_check
      _
    $region15: #{tpu_custom_call.1} parent=1 // pred_check_branch
      %41 = sbr.rel (0) target = $region17
    $region16: #{tpu_custom_call.1} parent=1 // pred_region
      %42 = dma.done [#allocation6], 256
    $region17: #{tpu_custom_call.1} parent=1 // pred_fallthru
      _
    %p43 = scmp.eq.s32.totalorder 0, 0
    // Predicated region
    $region18: #{tpu_custom_call.1} parent=1 // pred_check
      %p44 = pneg %p43
    $region19: #{tpu_custom_call.1} parent=1 // pred_check_branch
      %46 = sbr.rel (%p44) target = $region21
    $region20: #{tpu_custom_call.1} parent=1 // pred_region
      %47 = vst [vmem:[#allocation7] sm:$0xff] 0.0
      %48 = vst [vmem:[#allocation8] sm:$0xff] 0.0
    $region21: #{tpu_custom_call.1} parent=1 // pred_fallthru
      _
    %v49 = vld [vmem:[#allocation2] sm:$0xff]
    %v50 = vld [vmem:[#allocation2 + $0x8] sm:$0xff]
    %v51 = vld [vmem:[#allocation5] sm:$0xff]
    %v52 = vld [vmem:[#allocation5 + $0x8] sm:$0xff]
    %vm53 = vcmp.ne.f32.partialorder %v51, -1.0
    %vm54 = vcmp.ne.f32.partialorder %v52, -1.0
    %v55 = vsub.f32 %v49, %v51
    %v56 = vsub.f32 %v50, %v52
    %v57 = vmul.f32 %v55, %v55
    %v58 = vmul.f32 %v56, %v56
    %v59 = vsel %vm53, %v57, 0.0
    %v60 = vsel %vm54, %v58, 0.0
    %v61 = vsel %vm53, 1, 0
    %v62 = vsel %vm54, 1, 0
    %v63 = vcvt.s32.f32 %v61
    %v64 = vcvt.s32.f32 %v62
    %v65 = vld [vmem:[#allocation7] sm:$0xff]
    %v66 = vadd.f32 %v59, %v60
    %v67 = vadd.f32 %v65, %v66
    %68 = vst [vmem:[#allocation7] sm:$0xff] %v67
    %v69 = vld [vmem:[#allocation8] sm:$0xff]
    %v70 = vadd.f32 %v63, %v64
    %v71 = vadd.f32 %v69, %v70
    %72 = vst [vmem:[#allocation8] sm:$0xff] %v71
    // Predicated region
    $region22: #{tpu_custom_call.1} parent=1 // pred_check
      _
    $region23: #{tpu_custom_call.1} parent=1 // pred_check_branch
      %74 = sbr.rel (0) target = $region25
    $region24: #{tpu_custom_call.1} parent=1 // pred_region
      %s76 = ssub.s32 128, 128
      %77 = vsyncadd [#allocation4], %s76
      %s79 = sshll.u32 [#allocation7], 4
      %s80 = int_to_ptr.vmem [resolvable:$true] %s79
      %82 = dma.vmem_to_hbm [thread:$0]  %s80, 128, %s2, [#allocation4]
    $region25: #{tpu_custom_call.1} parent=1 // pred_fallthru
      _
    // Predicated region
    $region26: #{tpu_custom_call.1} parent=1 // pred_check
      _
    $region27: #{tpu_custom_call.1} parent=1 // pred_check_branch
      %84 = sbr.rel (0) target = $region29
    $region28: #{tpu_custom_call.1} parent=1 // pred_region
      %s86 = ssub.s32 128, 128
      %87 = vsyncadd [#allocation9], %s86
      %s89 = sshll.u32 [#allocation8], 4
      %s90 = int_to_ptr.vmem [resolvable:$true] %s89
      %92 = dma.vmem_to_hbm [thread:$0]  %s90, 128, %s3, [#allocation9]
    $region29: #{tpu_custom_call.1} parent=1 // pred_fallthru
      _
    // Predicated region
    $region30: #{tpu_custom_call.1} parent=1 // pred_check
      _
    $region31: #{tpu_custom_call.1} parent=1 // pred_check_branch
      %94 = sbr.rel (0) target = $region33
    $region32: #{tpu_custom_call.1} parent=1 // pred_region
      %95 = dma.done [#allocation4], 128
    $region33: #{tpu_custom_call.1} parent=1 // pred_fallthru
      _
    // Predicated region
    $region34: #{tpu_custom_call.1} parent=1 // pred_check
      _
    $region35: #{tpu_custom_call.1} parent=1 // pred_check_branch
      %97 = sbr.rel (0) target = $region37
    $region36: #{tpu_custom_call.1} parent=1 // pred_region
      %98 = dma.done [#allocation9], 128
    $region37: #{tpu_custom_call.1} parent=1 // pred_fallthru
      _
    %99 = vsyncpa [#allocation3], 1
    %100 = vsyncpa [#allocation6], 1
    %101 = vsyncpa [#allocation4], 1
    %102 = vsyncpa [#allocation9], 1

</llo_original>
